<compile_context>
chip_gen: v7x
topology: tpu7x:2x2x1
jax: 0.10.0
libtpu: 0.0.40
codegen_flags: <defaults>
</compile_context>

<pallas_src>
import math
import functools

import jax
import jax.numpy as jnp
from jax import lax
from jax.experimental import pallas as pl
from jax.experimental.pallas import tpu as pltpu

BIAS = False
RELU = True

_VMEM_BUDGET_BYTES = 48 * 1024 * 1024   # conservative across v5e/v6e (128 MiB) and v7x (64 MiB)


def _pad2(rows, cols, itemsize=4):
    """Bytes of a (rows, cols) f32/i32 tile after (8,128) sublane/lane padding."""
    return (-(-rows // 8) * 8) * (-(-cols // 128) * 128) * itemsize


def _vmem_estimate_bytes(bb, Tx, Ty, D, H):
    """Rough padded-VMEM footprint of one grid step (double-buffered blocks + temporaries)."""
    blocks = 2 * (_pad2(bb * Tx, D) + _pad2(bb * Ty, D)       # x, y input blocks
                  + bb * _pad2(Ty, H)                          # output block (batch-plane padded)
                  + 2 * bb * _pad2(1, 1))                      # valid-len blocks
    temps = (2 * _pad2(bb * Tx, H) + _pad2(bb * Ty, H)         # k, v, q (2-D)
             + bb * (2 * _pad2(Tx, H) + 2 * _pad2(Ty, H))      # k, v, q, out (batched planes)
             + 3 * bb * _pad2(Ty, Tx))                         # wei / e / soft
    weights = 2 * 3 * _pad2(D, H)
    return blocks + temps + weights


def _pick_batch_block(B, Tx, Ty, D, H, budget=_VMEM_BUDGET_BYTES):
    divs = [d for d in range(1, B + 1) if B % d == 0]
    # second-minor alignment for the flattened (bb*T, D) blocks: multiple of 8 or full extent
    divs = [d for d in divs
            if ((d * Tx) % 8 == 0 or d == B) and ((d * Ty) % 8 == 0 or d == B)] or [B]
    cands = [d for d in divs if B // d >= 2] or divs            # >=2 steps: overlap + v7x 2 TCs
    mxu_fill = [d for d in cands if d * Tx >= 256]              # fills v6e/v7x 2x256^2 MXU
    if mxu_fill:
        bb = min(mxu_fill)                                      # smallest -> most pipeline steps
    else:
        deep = [d for d in cands if B // d >= 4]                # else keep the pipeline deep
        bb = max(deep) if deep else max(cands)
    while _vmem_estimate_bytes(bb, Tx, Ty, D, H) > budget:      # fit v7x's smaller VMEM
        smaller = [d for d in cands if d < bb]
        if not smaller:
            break
        bb = max(smaller)
    return bb


def _cross_attention_kernel(x_ref, y_ref, vlx_ref, vly_ref, wk_ref, wq_ref, wv_ref, o_ref,
                            *, batch_block, causal, mxu_dtype):
    Bb = batch_block
    Tx = x_ref.shape[0] // Bb
    Ty = y_ref.shape[0] // Bb
    H = wq_ref.shape[1]

    def mxu(a):   # optional narrow MXU inputs; accumulation stays f32
        return a if mxu_dtype is None else a.astype(mxu_dtype)

    # --- projections: one (Bb*T, D) @ (D, H) matmul each, LHS shared between k and v ---
    x2 = x_ref[...]                                   # (Bb*Tx, D) -- flattened in the wrapper
    y2 = y_ref[...]                                   # (Bb*Ty, D)
    xm = mxu(x2)
    k2 = jnp.dot(xm, wk_ref[...], preferred_element_type=jnp.float32)       # (Bb*Tx, H)
    v2 = jnp.dot(xm, wv_ref[...], preferred_element_type=jnp.float32)       # (Bb*Tx, H)
    q2 = jnp.dot(mxu(y2), wq_ref[...], preferred_element_type=jnp.float32)  # (Bb*Ty, H)
    if RELU:
        k2 = jnp.maximum(k2, 0.0)
        v2 = jnp.maximum(v2, 0.0)
        q2 = jnp.maximum(q2, 0.0)
    # scale on q (Ty*H elems) instead of on wei (Ty*Tx elems); identical since scale > 0
    q2 = q2 * (H ** -0.5)

    k = k2.reshape(Bb, Tx, H)
    v = v2.reshape(Bb, Tx, H)
    q = q2.reshape(Bb, Ty, H)

    wei = jnp.einsum("bqh,bkh->bqk", mxu(q), mxu(k),
                     preferred_element_type=jnp.float32)          # (Bb, Ty, Tx)

    # --- valid-length masking: low-rank pieces, single full-size select ---
    vx = vlx_ref[...]                                 # (Bb, 1, 1) int32
    vy = vly_ref[...]                                 # (Bb, 1, 1) int32
    t_row = lax.broadcasted_iota(jnp.int32, (Bb, Ty, 1), 1)
    s_col = lax.broadcasted_iota(jnp.int32, (Bb, 1, Tx), 2)
    mask = (t_row < vy) & (s_col < vx)                # broadcast -> (Bb, Ty, Tx)
    if causal:                                        # forward_mask is not None in the reference
        tril = (lax.broadcasted_iota(jnp.int32, (1, Ty, Tx), 2)
                <= lax.broadcasted_iota(jnp.int32, (1, Ty, Tx), 1))
        mask = mask & tril
    wei = jnp.where(mask, wei, -jnp.inf)

    # analytic "row entirely masked": t >= vy[b] or vx[b] == 0 (column 0 is always
    # causal-allowed when vx >= 1) -- replaces an isinf().all() pass over the score matrix.
    row_all_inf = (t_row >= vy) | (vx == 0)           # (Bb, Ty, 1)

    m = jnp.max(wei, axis=-1, keepdims=True)
    e = jnp.exp(wei - jnp.where(row_all_inf, 0.0, m))             # masked -> exp(-inf) = 0
    denom = jnp.sum(e, axis=-1, keepdims=True)
    inv = pl.reciprocal(jnp.where(row_all_inf, 1.0, denom), approx=True)   # EUP slot
    soft = jnp.where(row_all_inf, 0.0, e * inv)

    # dropout: identity (eval mode)
    out = jnp.einsum("bqk,bkh->bqh", mxu(soft), mxu(v),
                     preferred_element_type=jnp.float32)          # (Bb, Ty, H)
    o_ref[...] = out.astype(o_ref.dtype)


def cross_attention(x, y, valid_lens_x, valid_lens_y, wk, wq, wv, *,
                    causal=False, batch_block=None, mxu_dtype="auto",
                    input_buffering=2, interpret=False):
    """x: (B,Tx,D) f32, y: (B,Ty,D) f32, valid lens: (B,) i32, w*: (D,H) f32 -> (B,Ty,H) f32."""
    B, Tx, D = x.shape
    _, Ty, _ = y.shape
    H = wk.shape[1]

    bb = _pick_batch_block(B, Tx, Ty, D, H) if batch_block is None else batch_block
    assert B % bb == 0, "batch_block must divide batch"
    assert (bb * Tx) % 8 == 0 or bb == B, "bb*Tx must be a multiple of 8 (sublane tiling)"
    assert (bb * Ty) % 8 == 0 or bb == B, "bb*Ty must be a multiple of 8 (sublane tiling)"

    if mxu_dtype == "auto":
        # bf16 MXU inputs only pay off once the projection matmuls are MXU-sized
        mxu_dtype = jnp.bfloat16 if bb * Tx >= 256 else None
    if mxu_dtype is not None:
        # one-time weight cast in the wrapper: no per-step cast, half the resident weight VMEM
        wk, wq, wv = (w.astype(mxu_dtype) for w in (wk, wq, wv))

    # flatten (B, T, D) -> (B*T, D) in the wrapper so blocks load 2-D with no in-kernel reshape
    x2 = x.reshape(B * Tx, D)
    y2 = y.reshape(B * Ty, D)
    vlx = valid_lens_x.astype(jnp.int32).reshape(B, 1, 1)
    vly = valid_lens_y.astype(jnp.int32).reshape(B, 1, 1)

    kernel = functools.partial(_cross_attention_kernel, batch_block=bb,
                               causal=causal, mxu_dtype=mxu_dtype)

    # raise buffering only if profiling shows exposed input DMA; default stays double-buffered
    if input_buffering == 2:
        def xy_spec(shape, imap):
            return pl.BlockSpec(shape, imap)
    else:
        def xy_spec(shape, imap):
            return pl.BlockSpec(shape, imap, pipeline_mode=pl.Buffered(input_buffering))

    est = _vmem_estimate_bytes(bb, Tx, Ty, D, H)
    vmem_limit = min(_VMEM_BUDGET_BYTES, max(32 * 1024 * 1024, 2 * est))

    grid_spec = pltpu.PrefetchScalarGridSpec(
        num_scalar_prefetch=0,
        grid=(B // bb,),
        in_specs=[
            xy_spec((bb * Tx, D), lambda i: (i, 0)),            # x (flattened batch block)
            xy_spec((bb * Ty, D), lambda i: (i, 0)),            # y (flattened batch block)
            pl.BlockSpec((bb, 1, 1), lambda i: (i, 0, 0)),      # valid_lens_x (vectorized)
            pl.BlockSpec((bb, 1, 1), lambda i: (i, 0, 0)),      # valid_lens_y (vectorized)
            pl.BlockSpec((D, H), lambda i: (0, 0)),             # Wk (resident)
            pl.BlockSpec((D, H), lambda i: (0, 0)),             # Wq (resident)
            pl.BlockSpec((D, H), lambda i: (0, 0)),             # Wv (resident)
        ],
        out_specs=pl.BlockSpec((bb, Ty, H), lambda i: (i, 0, 0)),
    )

    return pl.pallas_call(
        kernel,
        out_shape=jax.ShapeDtypeStruct((B, Ty, H), jnp.float32),
        grid_spec=grid_spec,
        compiler_params=pltpu.CompilerParams(
            dimension_semantics=("parallel",),      # batch-block axis shards across v7x's 2 TCs
            vmem_limit_bytes=vmem_limit),
        interpret=interpret,
    )(x2, y2, vlx, vly, wk, wq, wv)


def _reference(x, y, valid_lens_x, valid_lens_y, wk, wq, wv, causal=False):
    """Pure-JAX transcription of the PyTorch forward (BIAS=False, RELU=True, eval mode)."""
    k = jnp.maximum(x @ wk, 0.0)
    q = jnp.maximum(y @ wq, 0.0)
    v = jnp.maximum(x @ wv, 0.0)
    wei = jnp.einsum("btd,bsd->bts", q, k) * (k.shape[-1] ** -0.5)
    Ty, Tx = q.shape[1], k.shape[1]
    t_idx = jnp.arange(Ty)[None, :, None]
    s_idx = jnp.arange(Tx)[None, None, :]
    if causal:
        wei = jnp.where(s_idx <= t_idx, wei, -jnp.inf)
    mask = (t_idx < valid_lens_y[:, None, None]) & (s_idx < valid_lens_x[:, None, None])
    wei = jnp.where(mask, wei, -jnp.inf)
    row_mask = jnp.all(jnp.isinf(wei), axis=2, keepdims=True)
    soft = jax.nn.softmax(jnp.where(row_mask, 0.0, wei), axis=2)
    wei = jnp.where(row_mask, 0.0, soft)
    return jnp.einsum("bts,bsh->bth", wei, v)


if __name__ == "__main__":
    B, Tx, Ty, D, H = 8, 16, 8, 32, 16

    key = jax.random.PRNGKey(0)
    kx, ky, kk, kq, kv = jax.random.split(key, 5)
    x = jax.random.normal(kx, (B, Tx, D), dtype=jnp.float32)
    y = jax.random.normal(ky, (B, Ty, D), dtype=jnp.float32)

    # nn.Linear(d_model, head_size) weights, stored transposed as (D, H); BIAS=False.
    bound = 1.0 / math.sqrt(D)
    wk = jax.random.uniform(kk, (D, H), jnp.float32, -bound, bound)
    wq = jax.random.uniform(kq, (D, H), jnp.float32, -bound, bound)
    wv = jax.random.uniform(kv, (D, H), jnp.float32, -bound, bound)

    # max(valid_lens) equals the padded lengths (as the torch code assumes); batch 3 has
    # vx == 0 (every output row zeroed), several batches have partially-masked rows.
    valid_lens_x = jnp.array([16, 10, 16, 0, 16, 7, 12, 16], dtype=jnp.int32)
    valid_lens_y = jnp.array([8, 5, 8, 8, 3, 8, 6, 8], dtype=jnp.int32)

    # f32 MXU path (auto keeps f32 at this small block size); tolerance covers the EUP recip.
    out = jax.block_until_ready(
        cross_attention(x, y, valid_lens_x, valid_lens_y, wk, wq, wv))
    ref = _reference(x, y, valid_lens_x, valid_lens_y, wk, wq, wv)
    assert out.shape == (B, Ty, H)
    assert jnp.allclose(out, ref, atol=5e-3, rtol=5e-3), "mismatch vs. JAX reference"

    # causal path (forward_mask is not None in the torch module)
    out_c = jax.block_until_ready(
        cross_attention(x, y, valid_lens_x, valid_lens_y, wk, wq, wv, causal=True))
    ref_c = _reference(x, y, valid_lens_x, valid_lens_y, wk, wq, wv, causal=True)
    assert jnp.allclose(out_c, ref_c, atol=5e-3, rtol=5e-3), "mismatch vs. causal reference"

    # bf16 MXU path (what "auto" enables once bb*Tx >= 256) -- loose sanity check only
    out_bf = jax.block_until_ready(
        cross_attention(x, y, valid_lens_x, valid_lens_y, wk, wq, wv,
                        mxu_dtype=jnp.bfloat16))
    assert bool(jnp.all(jnp.isfinite(out_bf)))
    assert float(jnp.max(jnp.abs(out_bf - ref))) < 0.25, "bf16 MXU path diverged"

    print("KERNEL_OK")
</pallas_src>

<mosaic_0001>
module attributes {stable_mosaic.version = 11 : i64} {
  func.func @_cross_attention_kernel(%arg0: i32, %arg1: memref<32x32xf32, #tpu.memory_space<vmem>>, %arg2: memref<16x32xf32, #tpu.memory_space<vmem>>, %arg3: memref<2x1x1xi32, #tpu.memory_space<vmem>>, %arg4: memref<2x1x1xi32, #tpu.memory_space<vmem>>, %arg5: memref<32x16xf32, #tpu.memory_space<vmem>>, %arg6: memref<32x16xf32, #tpu.memory_space<vmem>>, %arg7: memref<32x16xf32, #tpu.memory_space<vmem>>, %arg8: memref<2x8x16xf32, #tpu.memory_space<vmem>>) attributes {dimension_semantics = [#tpu.dimension_semantics<parallel>], iteration_bounds = array<i64: 4>, scalar_prefetch = 0 : i64, scratch_operands = 0 : i64, tpu.core_type = #tpu.core_type<tc>, window_params = [{transform_indices = @transform_0, window_bounds = array<i64: 32, 32>}, {transform_indices = @transform_1, window_bounds = array<i64: 16, 32>}, {transform_indices = @transform_2, window_bounds = array<i64: 2, 1, 1>}, {transform_indices = @transform_3, window_bounds = array<i64: 2, 1, 1>}, {pipeline_mode = #tpu.pipeline_mode<synchronous>, transform_indices = @transform_4, window_bounds = array<i64: 32, 16>}, {pipeline_mode = #tpu.pipeline_mode<synchronous>, transform_indices = @transform_5, window_bounds = array<i64: 32, 16>}, {pipeline_mode = #tpu.pipeline_mode<synchronous>, transform_indices = @transform_6, window_bounds = array<i64: 32, 16>}, {transform_indices = @transform_7, window_bounds = array<i64: 2, 8, 16>}]} {
    %c0 = arith.constant 0 : index
    %c0_0 = arith.constant 0 : index
    %0 = vector.load %arg1[%c0, %c0_0] : memref<32x32xf32, #tpu.memory_space<vmem>>, vector<32x32xf32>
    %c0_1 = arith.constant 0 : index
    %c0_2 = arith.constant 0 : index
    %1 = vector.load %arg2[%c0_1, %c0_2] : memref<16x32xf32, #tpu.memory_space<vmem>>, vector<16x32xf32>
    %c0_3 = arith.constant 0 : index
    %c0_4 = arith.constant 0 : index
    %2 = vector.load %arg5[%c0_3, %c0_4] : memref<32x16xf32, #tpu.memory_space<vmem>>, vector<32x16xf32>
    %cst = arith.constant dense<0.000000e+00> : vector<32x16xf32>
    %3 = tpu.matmul %0, %2, %cst {dimension_numbers = #tpu.dot_dimension_numbers<[1], [0], [0], [1], [0, 0, 1, 1], [], []>} : vector<32x32xf32>, vector<32x16xf32>, vector<32x16xf32> -> vector<32x16xf32>
    %c0_5 = arith.constant 0 : index
    %c0_6 = arith.constant 0 : index
    %4 = vector.load %arg7[%c0_5, %c0_6] : memref<32x16xf32, #tpu.memory_space<vmem>>, vector<32x16xf32>
    %cst_7 = arith.constant dense<0.000000e+00> : vector<32x16xf32>
    %5 = tpu.matmul %0, %4, %cst_7 {dimension_numbers = #tpu.dot_dimension_numbers<[1], [0], [0], [1], [0, 0, 1, 1], [], []>} : vector<32x32xf32>, vector<32x16xf32>, vector<32x16xf32> -> vector<32x16xf32>
    %c0_8 = arith.constant 0 : index
    %c0_9 = arith.constant 0 : index
    %6 = vector.load %arg6[%c0_8, %c0_9] : memref<32x16xf32, #tpu.memory_space<vmem>>, vector<32x16xf32>
    %cst_10 = arith.constant dense<0.000000e+00> : vector<16x16xf32>
    %7 = tpu.matmul %1, %6, %cst_10 {dimension_numbers = #tpu.dot_dimension_numbers<[1], [0], [0], [1], [0, 0, 1, 1], [], []>} : vector<16x32xf32>, vector<32x16xf32>, vector<16x16xf32> -> vector<16x16xf32>
    %cst_11 = arith.constant 0.000000e+00 : f32
    %8 = vector.broadcast %cst_11 : f32 to vector<32x16xf32>
    %9 = arith.maximumf %3, %8 : vector<32x16xf32>
    %cst_12 = arith.constant 0.000000e+00 : f32
    %10 = vector.broadcast %cst_12 : f32 to vector<32x16xf32>
    %11 = arith.maximumf %5, %10 : vector<32x16xf32>
    %cst_13 = arith.constant 0.000000e+00 : f32
    %12 = vector.broadcast %cst_13 : f32 to vector<16x16xf32>
    %13 = arith.maximumf %7, %12 : vector<16x16xf32>
    %cst_14 = arith.constant 2.500000e-01 : f32
    %14 = vector.broadcast %cst_14 : f32 to vector<16x16xf32>
    %15 = arith.mulf %13, %14 : vector<16x16xf32>
    %16 = vector.shape_cast %9 : vector<32x16xf32> to vector<2x16x16xf32>
    %17 = vector.shape_cast %11 : vector<32x16xf32> to vector<2x16x16xf32>
    %18 = vector.shape_cast %15 : vector<16x16xf32> to vector<2x8x16xf32>
    "tpu.trace_start"() <{level = 10 : i32, message = "bqh,bkh->bqk"}> : () -> ()
    %cst_15 = arith.constant dense<0.000000e+00> : vector<2x8x16xf32>
    %19 = tpu.matmul %18, %16, %cst_15 {dimension_numbers = #tpu.dot_dimension_numbers<[2], [2], [1], [1], [0, 0, 0, 1, 1, 1], [0], [0]>} : vector<2x8x16xf32>, vector<2x16x16xf32>, vector<2x8x16xf32> -> vector<2x8x16xf32>
    "tpu.trace_stop"() : () -> ()
    %c0_16 = arith.constant 0 : index
    %c0_17 = arith.constant 0 : index
    %c0_18 = arith.constant 0 : index
    %20 = vector.load %arg3[%c0_16, %c0_17, %c0_18] : memref<2x1x1xi32, #tpu.memory_space<vmem>>, vector<2x1x1xi32>
    %c0_19 = arith.constant 0 : index
    %c0_20 = arith.constant 0 : index
    %c0_21 = arith.constant 0 : index
    %21 = vector.load %arg4[%c0_19, %c0_20, %c0_21] : memref<2x1x1xi32, #tpu.memory_space<vmem>>, vector<2x1x1xi32>
    %22 = tpu.iota {dimensions = array<i32: 1>} : vector<2x8x1xi32>
    %23 = tpu.iota {dimensions = array<i32: 2>} : vector<2x1x16xi32>
    %24 = vector.broadcast %21 : vector<2x1x1xi32> to vector<2x8x1xi32>
    %25 = arith.cmpi slt, %22, %24 : vector<2x8x1xi32>
    %26 = vector.broadcast %20 : vector<2x1x1xi32> to vector<2x1x16xi32>
    %27 = arith.cmpi slt, %23, %26 : vector<2x1x16xi32>
    %28 = vector.broadcast %25 : vector<2x8x1xi1> to vector<2x8x16xi1>
    %29 = vector.broadcast %27 : vector<2x1x16xi1> to vector<2x8x16xi1>
    %30 = arith.andi %28, %29 : vector<2x8x16xi1>
    %cst_22 = arith.constant 0xFF800000 : f32
    %31 = vector.broadcast %cst_22 : f32 to vector<2x8x16xf32>
    %32 = arith.select %30, %19, %31 : vector<2x8x16xi1>, vector<2x8x16xf32>
    %33 = vector.broadcast %21 : vector<2x1x1xi32> to vector<2x8x1xi32>
    %34 = arith.cmpi sge, %22, %33 : vector<2x8x1xi32>
    %c0_i32 = arith.constant 0 : i32
    %35 = vector.broadcast %c0_i32 : i32 to vector<2x1x1xi32>
    %36 = arith.cmpi eq, %20, %35 : vector<2x1x1xi32>
    %37 = vector.broadcast %36 : vector<2x1x1xi1> to vector<2x8x1xi1>
    %38 = arith.ori %34, %37 : vector<2x8x1xi1>
    %cst_23 = arith.constant dense<0xFF800000> : vector<2x8xf32>
    %39 = vector.multi_reduction <maximumf>, %32, %cst_23 [2] : vector<2x8x16xf32> to vector<2x8xf32>
    %40 = vector.shape_cast %39 : vector<2x8xf32> to vector<2x8x1xf32>
    %cst_24 = arith.constant 0.000000e+00 : f32
    %41 = vector.broadcast %cst_24 : f32 to vector<2x8x1xf32>
    %42 = arith.select %38, %41, %40 : vector<2x8x1xi1>, vector<2x8x1xf32>
    %43 = vector.broadcast %42 : vector<2x8x1xf32> to vector<2x8x16xf32>
    %44 = arith.subf %32, %43 : vector<2x8x16xf32>
    %45 = math.exp %44 : vector<2x8x16xf32>
    %cst_25 = arith.constant dense<0.000000e+00> : vector<2x8xf32>
    %46 = vector.multi_reduction <add>, %45, %cst_25 [2] : vector<2x8x16xf32> to vector<2x8xf32>
    %47 = vector.shape_cast %46 : vector<2x8xf32> to vector<2x8x1xf32>
    %cst_26 = arith.constant 1.000000e+00 : f32
    %48 = vector.broadcast %cst_26 : f32 to vector<2x8x1xf32>
    %49 = arith.select %38, %48, %47 : vector<2x8x1xi1>, vector<2x8x1xf32>
    %50 = tpu.reciprocal %49 {approx = true} : vector<2x8x1xf32> -> vector<2x8x1xf32>
    %51 = vector.broadcast %50 : vector<2x8x1xf32> to vector<2x8x16xf32>
    %52 = arith.mulf %45, %51 : vector<2x8x16xf32>
    %cst_27 = arith.constant 0.000000e+00 : f32
    %53 = vector.shape_cast %38 : vector<2x8x1xi1> to vector<2x8x1xi1>
    %54 = vector.broadcast %53 : vector<2x8x1xi1> to vector<2x8x16xi1>
    %55 = vector.broadcast %cst_27 : f32 to vector<2x8x16xf32>
    %56 = arith.select %54, %55, %52 : vector<2x8x16xi1>, vector<2x8x16xf32>
    "tpu.trace_start"() <{level = 10 : i32, message = "bqk,bkh->bqh"}> : () -> ()
    %cst_28 = arith.constant dense<0.000000e+00> : vector<2x8x16xf32>
    %57 = tpu.matmul %56, %17, %cst_28 {dimension_numbers = #tpu.dot_dimension_numbers<[2], [1], [1], [2], [0, 0, 0, 1, 1, 2], [0], [0]>} : vector<2x8x16xf32>, vector<2x16x16xf32>, vector<2x8x16xf32> -> vector<2x8x16xf32>
    "tpu.trace_stop"() : () -> ()
    %c0_29 = arith.constant 0 : index
    %c0_30 = arith.constant 0 : index
    %c0_31 = arith.constant 0 : index
    %58 = vector.load %arg8[%c0_29, %c0_30, %c0_31] : memref<2x8x16xf32, #tpu.memory_space<vmem>>, vector<2x8x16xf32>
    tpu.vector_store %arg8[%c0_29, %c0_30, %c0_31], %57 {strides = array<i32>} : memref<2x8x16xf32, #tpu.memory_space<vmem>>, vector<2x8x16xf32>,
    return
  }
  func.func @transform_0(%arg0: i32) -> (i32, i32) {
    %c0_i32 = arith.constant 0 : i32
    %c0_i32_0 = arith.constant 0 : i32
    return %arg0, %c0_i32 : i32, i32
  }
  func.func @transform_1(%arg0: i32) -> (i32, i32) {
    %c0_i32 = arith.constant 0 : i32
    %c0_i32_0 = arith.constant 0 : i32
    return %arg0, %c0_i32 : i32, i32
  }
  func.func @transform_2(%arg0: i32) -> (i32, i32, i32) {
    %c0_i32 = arith.constant 0 : i32
    %c0_i32_0 = arith.constant 0 : i32
    %c0_i32_1 = arith.constant 0 : i32
    return %arg0, %c0_i32, %c0_i32_0 : i32, i32, i32
  }
  func.func @transform_3(%arg0: i32) -> (i32, i32, i32) {
    %c0_i32 = arith.constant 0 : i32
    %c0_i32_0 = arith.constant 0 : i32
    %c0_i32_1 = arith.constant 0 : i32
    return %arg0, %c0_i32, %c0_i32_0 : i32, i32, i32
  }
  func.func @transform_4(%arg0: i32) -> (i32, i32) {
    %c0_i32 = arith.constant 0 : i32
    %c0_i32_0 = arith.constant 0 : i32
    %c0_i32_1 = arith.constant 0 : i32
    return %c0_i32, %c0_i32_0 : i32, i32
  }
  func.func @transform_5(%arg0: i32) -> (i32, i32) {
    %c0_i32 = arith.constant 0 : i32
    %c0_i32_0 = arith.constant 0 : i32
    %c0_i32_1 = arith.constant 0 : i32
    return %c0_i32, %c0_i32_0 : i32, i32
  }
  func.func @transform_6(%arg0: i32) -> (i32, i32) {
    %c0_i32 = arith.constant 0 : i32
    %c0_i32_0 = arith.constant 0 : i32
    %c0_i32_1 = arith.constant 0 : i32
    return %c0_i32, %c0_i32_0 : i32, i32
  }
  func.func @transform_7(%arg0: i32) -> (i32, i32, i32) {
    %c0_i32 = arith.constant 0 : i32
    %c0_i32_0 = arith.constant 0 : i32
    %c0_i32_1 = arith.constant 0 : i32
    return %arg0, %c0_i32, %c0_i32_0 : i32, i32, i32
  }
}

</mosaic_0001>

<llo_original>
// kernel: tpu_custom_call.1
$region0: #{tpu_custom_call.1}
  #allocation0 [shape = 'u32[]', space=smem, size = 0x4, offset = 0x4, fixed_abs, tag = 'smem constant byte address 0x4 - core index']
  #allocation1 [shape = 'u32[144,128]{1,0:T(1,128)}', space=vmem, size = 0x12000, scoped, tag = 'internal scratch']
  %s0 = inlined_call_operand.vmem [shape: f32[128,32], index: 0, kind: input, shape index: {}]
  %s1 = inlined_call_operand.vmem [shape: f32[64,32], index: 1, kind: input, shape index: {}]
  %s2 = inlined_call_operand.vmem [shape: s32[8,1,1], index: 2, kind: input, shape index: {}]
  %s3 = inlined_call_operand.vmem [shape: s32[8,1,1], index: 3, kind: input, shape index: {}]
  %s4 = inlined_call_operand.vmem [shape: f32[32,16], index: 4, kind: input, shape index: {}]
  %s5 = inlined_call_operand.vmem [shape: f32[32,16], index: 5, kind: input, shape index: {}]
  %s6 = inlined_call_operand.vmem [shape: f32[32,16], index: 6, kind: input, shape index: {}]
  %s7 = inlined_call_operand.hbm [shape: f32[8,8,16], index: 7, kind: output, shape index: {}]
  %s8 = sld [smem:[#allocation0]]
  $region61: #{tpu_custom_call.1} parent=0
    _
  %s10 = ssub.s32 1, %s8
  %s11 = scalar_select 0, %s10, %s8
  $region1: #{tpu_custom_call.1} parent=0
    #allocation2 [shape = 'u8[16384]{0}', space=vmem, size = 0x4000, scoped, tag = 'output window, operand 0']
    #allocation3 [shape = 's32[2]{0}', space=sflag, size = 0x8, scoped, tag = 'scoped memory for tpu_custom_call.1']
    %12 = vsyncpa [#allocation3], 0
    %s13 = scalar_lea.sflag [#allocation3], 1
    %14 = vsyncpa %s13, 0
    loop: start=0, step=1, limit=6
    $region2: #{tpu_custom_call.1} parent=1 // loop_pre_header
      _
    $region3: #{tpu_custom_call.1} parent=1 // loop_header
      %s16 = sphi 0, %s20
      %p17 = scmp.ge.s32.totalorder %s16, 6
      %s26 = sphi 0, %s28
      %s29 = sphi 0, %s26
      %s30 = sphi 0, %s29
      %s46 = sphi 0, %s30
      %s52 = sphi 0, %s54
      %s55 = sphi 0, %s52
      %s56 = sphi 0, %s55
      %s72 = sphi 0, %s56
      %s78 = sphi 0, %s80
      %s81 = sphi 0, %s78
      %s82 = sphi 0, %s81
      %s98 = sphi 0, %s82
      %s104 = sphi 0, %s106
      %s107 = sphi 0, %s104
      %s108 = sphi 0, %s107
      %s124 = sphi 0, %s108
      %s128 = sphi 0, %s128
      %s130 = sphi 0, %s128
      %s131 = sphi 0, %s130
      %s145 = sphi 0, %s131
      %s149 = sphi 0, %s149
      %s151 = sphi 0, %s149
      %s152 = sphi 0, %s151
      %s166 = sphi 0, %s152
      %s170 = sphi 0, %s170
      %s172 = sphi 0, %s170
      %s173 = sphi 0, %s172
      %s187 = sphi 0, %s173
      %s193 = sphi 0, %s195
      %s196 = sphi 0, %s193
      %s197 = sphi 0, %s196
      %s213 = sphi 0, %s197
    $region4: #{tpu_custom_call.1} parent=1 // loop_header_branch
      %19 = sbr.rel (%p17) target = $region8
    $region5: #{tpu_custom_call.1} parent=1 // loop_body
      %s21 = ssub.s32 %s16, 1
      %s22 = ssub.s32 %s16, 2
      %s23 = sadd.s32 %s16, 1
      %s24 = ssub.s32 %s16, %s23
      %p25 = scmp.eq.s32.totalorder %s24, 0
      %s27 = sadd.s32 %s26, 1
      %s28 = scalar_select %p25, %s26, %s27
      %p31 = pneg %p25
      %p32 = scmp.eq.s32.totalorder %s16, 3
      %p33 = por %p31, %p32
      %p34 = scmp.ne.s32.totalorder %s26, %s29
      %p35 = scmp.eq.s32.totalorder %s16, 0
      %p36 = por %p34, %p35
      %p37 = scmp.ne.s32.totalorder %s26, %s29
      %p38 = scmp.eq.s32.totalorder %s21, 3
      %p39 = por %p37, %p38
      %p40 = scmp.ne.s32.totalorder %s29, %s30
      %p41 = scmp.eq.s32.totalorder %s21, 0
      %p42 = por %p40, %p41
      %p43 = scmp.ne.s32.totalorder %s29, %s30
      %p44 = scmp.eq.s32.totalorder %s22, 3
      %p45 = por %p43, %p44
      %p47 = scmp.ne.s32.totalorder %s30, %s46
      %p48 = scmp.eq.s32.totalorder %s22, 0
      %p49 = por %p47, %p48
      %s50 = ssub.s32 %s16, %s23
      %p51 = scmp.eq.s32.totalorder %s50, 0
      %s53 = sadd.s32 %s52, 1
      %s54 = scalar_select %p51, %s52, %s53
      %p57 = pneg %p51
      %p58 = scmp.eq.s32.totalorder %s16, 3
      %p59 = por %p57, %p58
      %p60 = scmp.ne.s32.totalorder %s52, %s55
      %p61 = scmp.eq.s32.totalorder %s16, 0
      %p62 = por %p60, %p61
      %p63 = scmp.ne.s32.totalorder %s52, %s55
      %p64 = scmp.eq.s32.totalorder %s21, 3
      %p65 = por %p63, %p64
      %p66 = scmp.ne.s32.totalorder %s55, %s56
      %p67 = scmp.eq.s32.totalorder %s21, 0
      %p68 = por %p66, %p67
      %p69 = scmp.ne.s32.totalorder %s55, %s56
      %p70 = scmp.eq.s32.totalorder %s22, 3
      %p71 = por %p69, %p70
      %p73 = scmp.ne.s32.totalorder %s56, %s72
      %p74 = scmp.eq.s32.totalorder %s22, 0
      %p75 = por %p73, %p74
      %s76 = ssub.s32 %s16, %s23
      %p77 = scmp.eq.s32.totalorder %s76, 0
      %s79 = sadd.s32 %s78, 1
      %s80 = scalar_select %p77, %s78, %s79
      %p83 = pneg %p77
      %p84 = scmp.eq.s32.totalorder %s16, 3
      %p85 = por %p83, %p84
      %p86 = scmp.ne.s32.totalorder %s78, %s81
      %p87 = scmp.eq.s32.totalorder %s16, 0
      %p88 = por %p86, %p87
      %p89 = scmp.ne.s32.totalorder %s78, %s81
      %p90 = scmp.eq.s32.totalorder %s21, 3
      %p91 = por %p89, %p90
      %p92 = scmp.ne.s32.totalorder %s81, %s82
      %p93 = scmp.eq.s32.totalorder %s21, 0
      %p94 = por %p92, %p93
      %p95 = scmp.ne.s32.totalorder %s81, %s82
      %p96 = scmp.eq.s32.totalorder %s22, 3
      %p97 = por %p95, %p96
      %p99 = scmp.ne.s32.totalorder %s82, %s98
      %p100 = scmp.eq.s32.totalorder %s22, 0
      %p101 = por %p99, %p100
      %s102 = ssub.s32 %s16, %s23
      %p103 = scmp.eq.s32.totalorder %s102, 0
      %s105 = sadd.s32 %s104, 1
      %s106 = scalar_select %p103, %s104, %s105
      %p109 = pneg %p103
      %p110 = scmp.eq.s32.totalorder %s16, 3
      %p111 = por %p109, %p110
      %p112 = scmp.ne.s32.totalorder %s104, %s107
      %p113 = scmp.eq.s32.totalorder %s16, 0
      %p114 = por %p112, %p113
      %p115 = scmp.ne.s32.totalorder %s104, %s107
      %p116 = scmp.eq.s32.totalorder %s21, 3
      %p117 = por %p115, %p116
      %p118 = scmp.ne.s32.totalorder %s107, %s108
      %p119 = scmp.eq.s32.totalorder %s21, 0
      %p120 = por %p118, %p119
      %p121 = scmp.ne.s32.totalorder %s107, %s108
      %p122 = scmp.eq.s32.totalorder %s22, 3
      %p123 = por %p121, %p122
      %p125 = scmp.ne.s32.totalorder %s108, %s124
      %p126 = scmp.eq.s32.totalorder %s22, 0
      %p127 = por %p125, %p126
      %s129 = sadd.s32 %s128, 1
      %p132 = scmp.eq.s32.totalorder %s16, 3
      %p133 = scmp.ne.s32.totalorder %s128, %s130
      %p134 = scmp.eq.s32.totalorder %s16, 0
      %p135 = por %p133, %p134
      %p136 = scmp.ne.s32.totalorder %s128, %s130
      %p137 = scmp.eq.s32.totalorder %s21, 3
      %p138 = por %p136, %p137
      %p139 = scmp.ne.s32.totalorder %s130, %s131
      %p140 = scmp.eq.s32.totalorder %s21, 0
      %p141 = por %p139, %p140
      %p142 = scmp.ne.s32.totalorder %s130, %s131
      %p143 = scmp.eq.s32.totalorder %s22, 3
      %p144 = por %p142, %p143
      %p146 = scmp.ne.s32.totalorder %s131, %s145
      %p147 = scmp.eq.s32.totalorder %s22, 0
      %p148 = por %p146, %p147
      %s150 = sadd.s32 %s149, 1
      %p153 = scmp.eq.s32.totalorder %s16, 3
      %p154 = scmp.ne.s32.totalorder %s149, %s151
      %p155 = scmp.eq.s32.totalorder %s16, 0
      %p156 = por %p154, %p155
      %p157 = scmp.ne.s32.totalorder %s149, %s151
      %p158 = scmp.eq.s32.totalorder %s21, 3
      %p159 = por %p157, %p158
      %p160 = scmp.ne.s32.totalorder %s151, %s152
      %p161 = scmp.eq.s32.totalorder %s21, 0
      %p162 = por %p160, %p161
      %p163 = scmp.ne.s32.totalorder %s151, %s152
      %p164 = scmp.eq.s32.totalorder %s22, 3
      %p165 = por %p163, %p164
      %p167 = scmp.ne.s32.totalorder %s152, %s166
      %p168 = scmp.eq.s32.totalorder %s22, 0
      %p169 = por %p167, %p168
      %s171 = sadd.s32 %s170, 1
      %p174 = scmp.eq.s32.totalorder %s16, 3
      %p175 = scmp.ne.s32.totalorder %s170, %s172
      %p176 = scmp.eq.s32.totalorder %s16, 0
      %p177 = por %p175, %p176
      %p178 = scmp.ne.s32.totalorder %s170, %s172
      %p179 = scmp.eq.s32.totalorder %s21, 3
      %p180 = por %p178, %p179
      %p181 = scmp.ne.s32.totalorder %s172, %s173
      %p182 = scmp.eq.s32.totalorder %s21, 0
      %p183 = por %p181, %p182
      %p184 = scmp.ne.s32.totalorder %s172, %s173
      %p185 = scmp.eq.s32.totalorder %s22, 3
      %p186 = por %p184, %p185
      %p188 = scmp.ne.s32.totalorder %s173, %s187
      %p189 = scmp.eq.s32.totalorder %s22, 0
      %p190 = por %p188, %p189
      %s191 = ssub.s32 %s16, %s23
      %p192 = scmp.eq.s32.totalorder %s191, 0
      %s194 = sadd.s32 %s193, 1
      %s195 = scalar_select %p192, %s193, %s194
      %p198 = pneg %p192
      %p199 = scmp.eq.s32.totalorder %s16, 3
      %p200 = por %p198, %p199
      %p201 = scmp.ne.s32.totalorder %s193, %s196
      %p202 = scmp.eq.s32.totalorder %s16, 0
      %p203 = por %p201, %p202
      %p204 = scmp.ne.s32.totalorder %s193, %s196
      %p205 = scmp.eq.s32.totalorder %s21, 3
      %p206 = por %p204, %p205
      %p207 = scmp.ne.s32.totalorder %s196, %s197
      %p208 = scmp.eq.s32.totalorder %s21, 0
      %p209 = por %p207, %p208
      %p210 = scmp.ne.s32.totalorder %s196, %s197
      %p211 = scmp.eq.s32.totalorder %s22, 3
      %p212 = por %p210, %p211
      %p214 = scmp.ne.s32.totalorder %s197, %s213
      %p215 = scmp.eq.s32.totalorder %s22, 0
      %p216 = por %p214, %p215
      %p217 = scmp.le.s32.totalorder 1, %s16
      %p218 = scmp.lt.s32.totalorder %s16, 5
      %p219 = pnand %p217, %p218
      %p220 = pneg %p219
      // Predicated region
      $region9: #{tpu_custom_call.1} parent=5 // pred_check
        _
      $region10: #{tpu_custom_call.1} parent=5 // pred_check_branch
        %222 = sbr.rel (%p219) target = $region12
      $region11: #{tpu_custom_call.1} parent=5 // pred_region
        %s223 = ssub.s32 %s16, 1
        // Predicated region
        $region13: #{tpu_custom_call.1} parent=11 // pred_check
          %p224 = pneg %p141
        $region14: #{tpu_custom_call.1} parent=11 // pred_check_branch
          %226 = sbr.rel (%p224) target = $region16
        $region15: #{tpu_custom_call.1} parent=11 // pred_region
          _
        $region16: #{tpu_custom_call.1} parent=11 // pred_fallthru
          _
        // Predicated region
        $region17: #{tpu_custom_call.1} parent=11 // pred_check
          %p227 = pneg %p162
        $region18: #{tpu_custom_call.1} parent=11 // pred_check_branch
          %229 = sbr.rel (%p227) target = $region20
        $region19: #{tpu_custom_call.1} parent=11 // pred_region
          _
        $region20: #{tpu_custom_call.1} parent=11 // pred_fallthru
          _
        // Predicated region
        $region21: #{tpu_custom_call.1} parent=11 // pred_check
          %p230 = pneg %p183
        $region22: #{tpu_custom_call.1} parent=11 // pred_check_branch
          %232 = sbr.rel (%p230) target = $region24
        $region23: #{tpu_custom_call.1} parent=11 // pred_region
          _
        $region24: #{tpu_custom_call.1} parent=11 // pred_fallthru
          _
      $region12: #{tpu_custom_call.1} parent=5 // pred_fallthru
        _
      %p233 = scmp.lt.s32.totalorder %s16, 4
      // Predicated region
      $region25: #{tpu_custom_call.1} parent=5 // pred_check
        %p234 = pneg %p233
      $region26: #{tpu_custom_call.1} parent=5 // pred_check_branch
        %236 = sbr.rel (%p234) target = $region28
      $region27: #{tpu_custom_call.1} parent=5 // pred_region
        // Predicated region
        $region29: #{tpu_custom_call.1} parent=27 // pred_check
          %p237 = pneg %p36
        $region30: #{tpu_custom_call.1} parent=27 // pred_check_branch
          %239 = sbr.rel (%p237) target = $region32
        $region31: #{tpu_custom_call.1} parent=27 // pred_region
          %s240 = smul.u32 4, %s16
          %p241 = scmp.lt.s32.totalorder %s240, 15
          %s242 = scalar_select %p241, %s240, 15
          %s243 = smul.addr %s242, 8
          %s244 = scalar_lea.vmem %s0, %s243
          %s245 = smul.u32 4, %s16
        $region32: #{tpu_custom_call.1} parent=27 // pred_fallthru
          _
        // Predicated region
        $region33: #{tpu_custom_call.1} parent=27 // pred_check
          %p246 = pneg %p62
        $region34: #{tpu_custom_call.1} parent=27 // pred_check_branch
          %248 = sbr.rel (%p246) target = $region36
        $region35: #{tpu_custom_call.1} parent=27 // pred_region
          %s249 = smul.u32 2, %s16
          %p250 = scmp.lt.s32.totalorder %s249, 7
          %s251 = scalar_select %p250, %s249, 7
          %s252 = smul.addr %s251, 8
          %s253 = scalar_lea.vmem %s1, %s252
          %s254 = smul.u32 2, %s16
        $region36: #{tpu_custom_call.1} parent=27 // pred_fallthru
          _
        // Predicated region
        $region37: #{tpu_custom_call.1} parent=27 // pred_check
          %p255 = pneg %p88
        $region38: #{tpu_custom_call.1} parent=27 // pred_check_branch
          %257 = sbr.rel (%p255) target = $region40
        $region39: #{tpu_custom_call.1} parent=27 // pred_region
          %s258 = smul.u32 2, %s16
          %p259 = scmp.lt.s32.totalorder %s258, 7
          %s260 = scalar_select %p259, %s258, 7
          %s261 = scalar_lea.vmem %s2, %s260
          %s262 = smul.u32 2, %s16
        $region40: #{tpu_custom_call.1} parent=27 // pred_fallthru
          _
        // Predicated region
        $region41: #{tpu_custom_call.1} parent=27 // pred_check
          %p263 = pneg %p114
        $region42: #{tpu_custom_call.1} parent=27 // pred_check_branch
          %265 = sbr.rel (%p263) target = $region44
        $region43: #{tpu_custom_call.1} parent=27 // pred_region
          %s266 = smul.u32 2, %s16
          %p267 = scmp.lt.s32.totalorder %s266, 7
          %s268 = scalar_select %p267, %s266, 7
          %s269 = scalar_lea.vmem %s3, %s268
          %s270 = smul.u32 2, %s16
        $region44: #{tpu_custom_call.1} parent=27 // pred_fallthru
          _
      $region28: #{tpu_custom_call.1} parent=5 // pred_fallthru
        _
      %p271 = scmp.le.s32.totalorder 1, %s16
      %p272 = scmp.lt.s32.totalorder %s16, 5
      %p273 = pnand %p271, %p272
      %p274 = pneg %p273
      // Predicated region
      $region45: #{tpu_custom_call.1} parent=5 // pred_check
        _
      $region46: #{tpu_custom_call.1} parent=5 // pred_check_branch
        %276 = sbr.rel (%p273) target = $region48
      $region47: #{tpu_custom_call.1} parent=5 // pred_region
        %s277 = ssub.s32 %s16, 1
        %s278 = smul.u32 4, %s21
        %p279 = scmp.lt.s32.totalorder %s278, 15
        %s280 = scalar_select %p279, %s278, 15
        %s281 = smul.addr %s280, 8
        %s282 = scalar_lea.vmem %s0, %s281
        %p283 = pneg %p42
        %p284 = pneg %p39
        %s285 = smul.u32 2, %s21
        %p286 = scmp.lt.s32.totalorder %s285, 7
        %s287 = scalar_select %p286, %s285, 7
        %s288 = smul.addr %s287, 8
        %s289 = scalar_lea.vmem %s1, %s288
        %p290 = pneg %p68
        %p291 = pneg %p65
        %s292 = smul.u32 2, %s21
        %p293 = scmp.lt.s32.totalorder %s292, 7
        %s294 = scalar_select %p293, %s292, 7
        %s295 = scalar_lea.vmem %s2, %s294
        %p296 = pneg %p94
        %p297 = pneg %p91
        %s298 = smul.u32 2, %s21
        %p299 = scmp.lt.s32.totalorder %s298, 7
        %s300 = scalar_select %p299, %s298, 7
        %s301 = scalar_lea.vmem %s3, %s300
        %p302 = pneg %p120
        %p303 = pneg %p117
        %p304 = pneg %p141
        %p305 = pneg %p138
        %p306 = pneg %p162
        %p307 = pneg %p159
        %p308 = pneg %p183
        %p309 = pneg %p180
        %p310 = pneg %p209
        %p311 = pneg %p206
        %s312 = sand.u32 %s196, 1
        %s313 = scalar_lea.sflag [#allocation3], %s312
        %s314 = sand.u32 %s196, 1
        %s315 = smul.addr %s314, 16
        %s316 = scalar_lea.vmem [#allocation2], %s315
        %s317 = smul.u32 4, %s21
        %p318 = scmp.lt.s32.totalorder %s317, 15
        %s319 = scalar_select %p318, %s317, 15
        %s320 = smul.addr %s319, 8
        %s321 = scalar_lea.vmem %s0, %s320
        %s322 = smul.u32 4, %s21
        %s323 = smul.u32 2, %s21
        %p324 = scmp.lt.s32.totalorder %s323, 7
        %s325 = scalar_select %p324, %s323, 7
        %s326 = smul.addr %s325, 8
        %s327 = scalar_lea.vmem %s1, %s326
        %s328 = smul.u32 2, %s21
        %s329 = smul.u32 2, %s21
        %p330 = scmp.lt.s32.totalorder %s329, 7
        %s331 = scalar_select %p330, %s329, 7
        %s332 = scalar_lea.vmem %s2, %s331
        %s333 = smul.u32 2, %s21
        %s334 = smul.u32 2, %s21
        %p335 = scmp.lt.s32.totalorder %s334, 7
        %s336 = scalar_select %p335, %s334, 7
        %s337 = scalar_lea.vmem %s3, %s336
        %s338 = smul.u32 2, %s21
        %s339 = smul.u32 2, %s21
        %v340 = vld [vmem:[%s321] sm:$0xff]
        %v341 = vld [vmem:[%s321 + $0x8] sm:$0xff]
        %v342 = vld [vmem:[%s321 + $0x10] sm:$0xff]
        %v343 = vld [vmem:[%s321 + $0x18] sm:$0xff]
        %v344 = vld [vmem:[%s327] sm:$0xff]
        %v345 = vld [vmem:[%s327 + $0x8] sm:$0xff]
        %v346 = vld [vmem:[%s4] sm:$0xff]
        %v347 = vld [vmem:[%s4 + $0x8] sm:$0xff]
        %v348 = vld [vmem:[%s4 + $0x10] sm:$0xff]
        %v349 = vld [vmem:[%s4 + $0x18] sm:$0xff]
        %vm350 = vcmask 261120
        %v352 = vsel %vm350, %v340, 0
        %v355 = vsel %vm350, %v341, 0
        %v358 = vsel %vm350, %v342, 0
        %v361 = vsel %vm350, %v343, 0
        %363 = vmatprep.subr.mxu0 0.0
        %364 = vmatpush1.msra.mxu0 %v346
        %365 = vmatprep.subr.mxu0 0.0
        %366 = vmatpush1.msra.mxu0 %v347
        %367 = vmatprep.subr.mxu0 0.0
        %368 = vmatpush1.msra.mxu0 %v348
        %369 = vmatprep.subr.mxu0 0.0
        %370 = vmatpush1.msra.mxu0 %v349
        %371 = vmatprep.subr.mxu0 0.0
        %372 = vmatpush1.msra.mxu0 0.0
        %373 = vmatprep.subr.mxu0 0.0
        %374 = vmatpush1.msra.mxu0 0.0
        %375 = vmatprep.subr.mxu0 0.0
        %376 = vmatpush1.msra.mxu0 0.0
        %377 = vmatprep.subr.mxu0 0.0
        %378 = vmatpush1.msra.mxu0 0.0
        %379 = vmatprep.subr.mxu0 0.0
        %380 = vmatpush1.msra.mxu0 0.0
        %381 = vmatprep.subr.mxu0 0.0
        %382 = vmatpush1.msra.mxu0 0.0
        %383 = vmatprep.subr.mxu0 0.0
        %384 = vmatpush1.msra.mxu0 0.0
        %385 = vmatprep.subr.mxu0 0.0
        %386 = vmatpush1.msra.mxu0 0.0
        %387 = vmatprep.subr.mxu0 0.0
        %388 = vmatpush1.msra.mxu0 0.0
        %389 = vmatprep.subr.mxu0 0.0
        %390 = vmatpush1.msra.mxu0 0.0
        %391 = vmatprep.subr.mxu0 0.0
        %392 = vmatpush1.msra.mxu0 0.0
        %393 = vmatprep.subr.mxu0 0.0
        %394 = vmatpush1.msra.mxu0 0.0
        %395 = vmatprep.subr.mxu0 0.0
        %396 = vmatpush1.msra.mxu0 0.0
        %397 = vmatprep.subr.mxu0 0.0
        %398 = vmatpush1.msra.mxu0 0.0
        %399 = vmatprep.subr.mxu0 0.0
        %400 = vmatpush1.msra.mxu0 0.0
        %401 = vmatprep.subr.mxu0 0.0
        %402 = vmatpush1.msra.mxu0 0.0
        %403 = vmatprep.subr.mxu0 0.0
        %404 = vmatpush1.msra.mxu0 0.0
        %405 = vmatprep.subr.mxu0 0.0
        %406 = vmatpush1.msra.mxu0 0.0
        %407 = vmatprep.subr.mxu0 0.0
        %408 = vmatpush1.msra.mxu0 0.0
        %409 = vmatprep.subr.mxu0 0.0
        %410 = vmatpush1.msra.mxu0 0.0
        %411 = vmatprep.subr.mxu0 0.0
        %412 = vmatpush1.msra.mxu0 0.0
        %413 = vmatprep.subr.mxu0 0.0
        %414 = vmatpush1.msra.mxu0 0.0
        %415 = vmatprep.subr.mxu0 0.0
        %416 = vmatpush1.msra.mxu0 0.0
        %417 = vmatprep.subr.mxu0 0.0
        %418 = vmatpush1.msra.mxu0 0.0
        %419 = vmatprep.subr.mxu0 0.0
        %420 = vmatpush1.msra.mxu0 0.0
        %421 = vmatprep.subr.mxu0 0.0
        %422 = vmatpush1.msra.mxu0 0.0
        %423 = vmatprep.subr.mxu0 0.0
        %424 = vmatpush1.msra.mxu0 0.0
        %425 = vmatprep.subr.mxu0 0.0
        %426 = vmatpush1.msra.mxu0 0.0
        %427 = vmatprep.mubr.f32.mxu0 0.0
        %428 = vmatmul.mubr.f32.gmra.mrb[0].mxu0 %v352
        %v429 = vpop.f32.mrb[0].mxu0
        %v430 = vadd.f32 0.0, %v429
        %v431 = vpop.f32.mrb[0].mxu0
        %432 = vmatprep.mubr.f32.mxu0 0.0
        %433 = vmatmul.mubr.f32.gmra.mrb[0].mxu0 %v355
        %v434 = vpop.f32.mrb[0].mxu0
        %v435 = vadd.f32 0.0, %v434
        %v436 = vpop.f32.mrb[0].mxu0
        %437 = vmatprep.mubr.f32.mxu0 0.0
        %438 = vmatmul.mubr.f32.gmra.mrb[0].mxu0 %v358
        %v439 = vpop.f32.mrb[0].mxu0
        %v440 = vadd.f32 0.0, %v439
        %v441 = vpop.f32.mrb[0].mxu0
        %442 = vmatprep.mubr.f32.mxu0 0.0
        %443 = vmatmul.mubr.f32.gmra.mrb[0].mxu0 %v361
        %v444 = vpop.f32.mrb[0].mxu0
        %v445 = vadd.f32 0.0, %v444
        %v446 = vpop.f32.mrb[0].mxu0
        %447 = vdwg.mxu0
        %v448 = vld [vmem:[%s6] sm:$0xff]
        %v449 = vld [vmem:[%s6 + $0x8] sm:$0xff]
        %v450 = vld [vmem:[%s6 + $0x10] sm:$0xff]
        %v451 = vld [vmem:[%s6 + $0x18] sm:$0xff]
        %452 = vmatprep.subr.mxu0 0.0
        %453 = vmatpush1.msra.mxu0 %v448
        %454 = vmatprep.subr.mxu0 0.0
        %455 = vmatpush1.msra.mxu0 %v449
        %456 = vmatprep.subr.mxu0 0.0
        %457 = vmatpush1.msra.mxu0 %v450
        %458 = vmatprep.subr.mxu0 0.0
        %459 = vmatpush1.msra.mxu0 %v451
        %460 = vmatprep.subr.mxu0 0.0
        %461 = vmatpush1.msra.mxu0 0.0
        %462 = vmatprep.subr.mxu0 0.0
        %463 = vmatpush1.msra.mxu0 0.0
        %464 = vmatprep.subr.mxu0 0.0
        %465 = vmatpush1.msra.mxu0 0.0
        %466 = vmatprep.subr.mxu0 0.0
        %467 = vmatpush1.msra.mxu0 0.0
        %468 = vmatprep.subr.mxu0 0.0
        %469 = vmatpush1.msra.mxu0 0.0
        %470 = vmatprep.subr.mxu0 0.0
        %471 = vmatpush1.msra.mxu0 0.0
        %472 = vmatprep.subr.mxu0 0.0
        %473 = vmatpush1.msra.mxu0 0.0
        %474 = vmatprep.subr.mxu0 0.0
        %475 = vmatpush1.msra.mxu0 0.0
        %476 = vmatprep.subr.mxu0 0.0
        %477 = vmatpush1.msra.mxu0 0.0
        %478 = vmatprep.subr.mxu0 0.0
        %479 = vmatpush1.msra.mxu0 0.0
        %480 = vmatprep.subr.mxu0 0.0
        %481 = vmatpush1.msra.mxu0 0.0
        %482 = vmatprep.subr.mxu0 0.0
        %483 = vmatpush1.msra.mxu0 0.0
        %484 = vmatprep.subr.mxu0 0.0
        %485 = vmatpush1.msra.mxu0 0.0
        %486 = vmatprep.subr.mxu0 0.0
        %487 = vmatpush1.msra.mxu0 0.0
        %488 = vmatprep.subr.mxu0 0.0
        %489 = vmatpush1.msra.mxu0 0.0
        %490 = vmatprep.subr.mxu0 0.0
        %491 = vmatpush1.msra.mxu0 0.0
        %492 = vmatprep.subr.mxu0 0.0
        %493 = vmatpush1.msra.mxu0 0.0
        %494 = vmatprep.subr.mxu0 0.0
        %495 = vmatpush1.msra.mxu0 0.0
        %496 = vmatprep.subr.mxu0 0.0
        %497 = vmatpush1.msra.mxu0 0.0
        %498 = vmatprep.subr.mxu0 0.0
        %499 = vmatpush1.msra.mxu0 0.0
        %500 = vmatprep.subr.mxu0 0.0
        %501 = vmatpush1.msra.mxu0 0.0
        %502 = vmatprep.subr.mxu0 0.0
        %503 = vmatpush1.msra.mxu0 0.0
        %504 = vmatprep.subr.mxu0 0.0
        %505 = vmatpush1.msra.mxu0 0.0
        %506 = vmatprep.subr.mxu0 0.0
        %507 = vmatpush1.msra.mxu0 0.0
        %508 = vmatprep.subr.mxu0 0.0
        %509 = vmatpush1.msra.mxu0 0.0
        %510 = vmatprep.subr.mxu0 0.0
        %511 = vmatpush1.msra.mxu0 0.0
        %512 = vmatprep.subr.mxu0 0.0
        %513 = vmatpush1.msra.mxu0 0.0
        %514 = vmatprep.subr.mxu0 0.0
        %515 = vmatpush1.msra.mxu0 0.0
        %516 = vmatprep.mubr.f32.mxu0 0.0
        %517 = vmatmul.mubr.f32.gmra.mrb[0].mxu0 %v352
        %v518 = vpop.f32.mrb[0].mxu0
        %v519 = vadd.f32 0.0, %v518
        %v520 = vpop.f32.mrb[0].mxu0
        %521 = vmatprep.mubr.f32.mxu0 0.0
        %522 = vmatmul.mubr.f32.gmra.mrb[0].mxu0 %v355
        %v523 = vpop.f32.mrb[0].mxu0
        %v524 = vadd.f32 0.0, %v523
        %v525 = vpop.f32.mrb[0].mxu0
        %526 = vmatprep.mubr.f32.mxu0 0.0
        %527 = vmatmul.mubr.f32.gmra.mrb[0].mxu0 %v358
        %v528 = vpop.f32.mrb[0].mxu0
        %v529 = vadd.f32 0.0, %v528
        %v530 = vpop.f32.mrb[0].mxu0
        %531 = vmatprep.mubr.f32.mxu0 0.0
        %532 = vmatmul.mubr.f32.gmra.mrb[0].mxu0 %v361
        %v533 = vpop.f32.mrb[0].mxu0
        %v534 = vadd.f32 0.0, %v533
        %v535 = vpop.f32.mrb[0].mxu0
        %536 = vdwg.mxu0
        %v537 = vld [vmem:[%s5] sm:$0xff]
        %v538 = vld [vmem:[%s5 + $0x8] sm:$0xff]
        %v539 = vld [vmem:[%s5 + $0x10] sm:$0xff]
        %v540 = vld [vmem:[%s5 + $0x18] sm:$0xff]
        %v542 = vsel %vm350, %v344, 0
        %v545 = vsel %vm350, %v345, 0
        %547 = vmatprep.subr.mxu0 0.0
        %548 = vmatpush1.msra.mxu0 %v537
        %549 = vmatprep.subr.mxu0 0.0
        %550 = vmatpush1.msra.mxu0 %v538
        %551 = vmatprep.subr.mxu0 0.0
        %552 = vmatpush1.msra.mxu0 %v539
        %553 = vmatprep.subr.mxu0 0.0
        %554 = vmatpush1.msra.mxu0 %v540
        %555 = vmatprep.subr.mxu0 0.0
        %556 = vmatpush1.msra.mxu0 0.0
        %557 = vmatprep.subr.mxu0 0.0
        %558 = vmatpush1.msra.mxu0 0.0
        %559 = vmatprep.subr.mxu0 0.0
        %560 = vmatpush1.msra.mxu0 0.0
        %561 = vmatprep.subr.mxu0 0.0
        %562 = vmatpush1.msra.mxu0 0.0
        %563 = vmatprep.subr.mxu0 0.0
        %564 = vmatpush1.msra.mxu0 0.0
        %565 = vmatprep.subr.mxu0 0.0
        %566 = vmatpush1.msra.mxu0 0.0
        %567 = vmatprep.subr.mxu0 0.0
        %568 = vmatpush1.msra.mxu0 0.0
        %569 = vmatprep.subr.mxu0 0.0
        %570 = vmatpush1.msra.mxu0 0.0
        %571 = vmatprep.subr.mxu0 0.0
        %572 = vmatpush1.msra.mxu0 0.0
        %573 = vmatprep.subr.mxu0 0.0
        %574 = vmatpush1.msra.mxu0 0.0
        %575 = vmatprep.subr.mxu0 0.0
        %576 = vmatpush1.msra.mxu0 0.0
        %577 = vmatprep.subr.mxu0 0.0
        %578 = vmatpush1.msra.mxu0 0.0
        %579 = vmatprep.subr.mxu0 0.0
        %580 = vmatpush1.msra.mxu0 0.0
        %581 = vmatprep.subr.mxu0 0.0
        %582 = vmatpush1.msra.mxu0 0.0
        %583 = vmatprep.subr.mxu0 0.0
        %584 = vmatpush1.msra.mxu0 0.0
        %585 = vmatprep.subr.mxu0 0.0
        %586 = vmatpush1.msra.mxu0 0.0
        %587 = vmatprep.subr.mxu0 0.0
        %588 = vmatpush1.msra.mxu0 0.0
        %589 = vmatprep.subr.mxu0 0.0
        %590 = vmatpush1.msra.mxu0 0.0
        %591 = vmatprep.subr.mxu0 0.0
        %592 = vmatpush1.msra.mxu0 0.0
        %593 = vmatprep.subr.mxu0 0.0
        %594 = vmatpush1.msra.mxu0 0.0
        %595 = vmatprep.subr.mxu0 0.0
        %596 = vmatpush1.msra.mxu0 0.0
        %597 = vmatprep.subr.mxu0 0.0
        %598 = vmatpush1.msra.mxu0 0.0
        %599 = vmatprep.subr.mxu0 0.0
        %600 = vmatpush1.msra.mxu0 0.0
        %601 = vmatprep.subr.mxu0 0.0
        %602 = vmatpush1.msra.mxu0 0.0
        %603 = vmatprep.subr.mxu0 0.0
        %604 = vmatpush1.msra.mxu0 0.0
        %605 = vmatprep.subr.mxu0 0.0
        %606 = vmatpush1.msra.mxu0 0.0
        %607 = vmatprep.subr.mxu0 0.0
        %608 = vmatpush1.msra.mxu0 0.0
        %609 = vmatprep.subr.mxu0 0.0
        %610 = vmatpush1.msra.mxu0 0.0
        %611 = vmatprep.mubr.f32.mxu0 0.0
        %612 = vmatmul.mubr.f32.gmra.mrb[0].mxu0 %v542
        %v613 = vpop.f32.mrb[0].mxu0
        %v614 = vadd.f32 0.0, %v613
        %v615 = vpop.f32.mrb[0].mxu0
        %616 = vmatprep.mubr.f32.mxu0 0.0
        %617 = vmatmul.mubr.f32.gmra.mrb[0].mxu0 %v545
        %v618 = vpop.f32.mrb[0].mxu0
        %v619 = vadd.f32 0.0, %v618
        %v620 = vpop.f32.mrb[0].mxu0
        %621 = vdwg.mxu0
        %v622 = vmax.f32 %v430, 0.0
        %v623 = vmax.f32 %v435, 0.0
        %v624 = vmax.f32 %v440, 0.0
        %v625 = vmax.f32 %v445, 0.0
        %v626 = vmax.f32 %v519, 0.0
        %v627 = vmax.f32 %v524, 0.0
        %v628 = vmax.f32 %v529, 0.0
        %v629 = vmax.f32 %v534, 0.0
        %v630 = vmax.f32 %v614, 0.0
        %v631 = vmax.f32 %v619, 0.0
        %v632 = vmul.f32 %v630, 0.25
        %v633 = vmul.f32 %v631, 0.25
        %vm634 = vcmask 130048
        %v636 = vsel %vm634, %v632, 0
        %v639 = vsel %vm634, %v622, 0
        %v642 = vsel %vm634, %v623, 0
        %644 = vmatprep.subr.mxu0 0.0
        %645 = vmatpush1.xpose.msra.mxu0 %v639
        %646 = vmatprep.subr.mxu0 0.0
        %647 = vmatpush1.xpose.msra.mxu0 %v642
        %648 = vmatprep.subr.mxu0 0.0
        %649 = vmatpush1.xpose.msra.mxu0 0.0
        %650 = vmatprep.subr.mxu0 0.0
        %651 = vmatpush1.xpose.msra.mxu0 0.0
        %652 = vmatprep.subr.mxu0 0.0
        %653 = vmatpush1.xpose.msra.mxu0 0.0
        %654 = vmatprep.subr.mxu0 0.0
        %655 = vmatpush1.xpose.msra.mxu0 0.0
        %656 = vmatprep.subr.mxu0 0.0
        %657 = vmatpush1.xpose.msra.mxu0 0.0
        %658 = vmatprep.subr.mxu0 0.0
        %659 = vmatpush1.xpose.msra.mxu0 0.0
        %660 = vmatprep.subr.mxu0 0.0
        %661 = vmatpush1.xpose.msra.mxu0 0.0
        %662 = vmatprep.subr.mxu0 0.0
        %663 = vmatpush1.xpose.msra.mxu0 0.0
        %664 = vmatprep.subr.mxu0 0.0
        %665 = vmatpush1.xpose.msra.mxu0 0.0
        %666 = vmatprep.subr.mxu0 0.0
        %667 = vmatpush1.xpose.msra.mxu0 0.0
        %668 = vmatprep.subr.mxu0 0.0
        %669 = vmatpush1.xpose.msra.mxu0 0.0
        %670 = vmatprep.subr.mxu0 0.0
        %671 = vmatpush1.xpose.msra.mxu0 0.0
        %672 = vmatprep.subr.mxu0 0.0
        %673 = vmatpush1.xpose.msra.mxu0 0.0
        %674 = vmatprep.subr.mxu0 0.0
        %675 = vmatpush1.xpose.msra.mxu0 0.0
        %676 = vmatprep.subr.mxu0 0.0
        %677 = vmatpush1.xpose.msra.mxu0 0.0
        %678 = vmatprep.subr.mxu0 0.0
        %679 = vmatpush1.xpose.msra.mxu0 0.0
        %680 = vmatprep.subr.mxu0 0.0
        %681 = vmatpush1.xpose.msra.mxu0 0.0
        %682 = vmatprep.subr.mxu0 0.0
        %683 = vmatpush1.xpose.msra.mxu0 0.0
        %684 = vmatprep.subr.mxu0 0.0
        %685 = vmatpush1.xpose.msra.mxu0 0.0
        %686 = vmatprep.subr.mxu0 0.0
        %687 = vmatpush1.xpose.msra.mxu0 0.0
        %688 = vmatprep.subr.mxu0 0.0
        %689 = vmatpush1.xpose.msra.mxu0 0.0
        %690 = vmatprep.subr.mxu0 0.0
        %691 = vmatpush1.xpose.msra.mxu0 0.0
        %692 = vmatprep.subr.mxu0 0.0
        %693 = vmatpush1.xpose.msra.mxu0 0.0
        %694 = vmatprep.subr.mxu0 0.0
        %695 = vmatpush1.xpose.msra.mxu0 0.0
        %696 = vmatprep.subr.mxu0 0.0
        %697 = vmatpush1.xpose.msra.mxu0 0.0
        %698 = vmatprep.subr.mxu0 0.0
        %699 = vmatpush1.xpose.msra.mxu0 0.0
        %700 = vmatprep.subr.mxu0 0.0
        %701 = vmatpush1.xpose.msra.mxu0 0.0
        %702 = vmatprep.subr.mxu0 0.0
        %703 = vmatpush1.xpose.msra.mxu0 0.0
        %704 = vmatprep.subr.mxu0 0.0
        %705 = vmatpush1.xpose.msra.mxu0 0.0
        %706 = vmatprep.subr.mxu0 0.0
        %707 = vmatpush1.xpose.msra.mxu0 0.0
        %708 = vmatprep.mubr.f32.mxu0 0.0
        %709 = vmatmul.mubr.f32.gmra.mrb[0].mxu0 %v636
        %v710 = vpop.f32.mrb[0].mxu0
        %v711 = vadd.f32 0.0, %v710
        %v712 = vpop.f32.mrb[0].mxu0
        %713 = vdwg.mxu0
        %v715 = vsel %vm634, %v633, 0
        %v718 = vsel %vm634, %v624, 0
        %v721 = vsel %vm634, %v625, 0
        %723 = vmatprep.subr.mxu0 0.0
        %724 = vmatpush1.xpose.msra.mxu0 %v718
        %725 = vmatprep.subr.mxu0 0.0
        %726 = vmatpush1.xpose.msra.mxu0 %v721
        %727 = vmatprep.subr.mxu0 0.0
        %728 = vmatpush1.xpose.msra.mxu0 0.0
        %729 = vmatprep.subr.mxu0 0.0
        %730 = vmatpush1.xpose.msra.mxu0 0.0
        %731 = vmatprep.subr.mxu0 0.0
        %732 = vmatpush1.xpose.msra.mxu0 0.0
        %733 = vmatprep.subr.mxu0 0.0
        %734 = vmatpush1.xpose.msra.mxu0 0.0
        %735 = vmatprep.subr.mxu0 0.0
        %736 = vmatpush1.xpose.msra.mxu0 0.0
        %737 = vmatprep.subr.mxu0 0.0
        %738 = vmatpush1.xpose.msra.mxu0 0.0
        %739 = vmatprep.subr.mxu0 0.0
        %740 = vmatpush1.xpose.msra.mxu0 0.0
        %741 = vmatprep.subr.mxu0 0.0
        %742 = vmatpush1.xpose.msra.mxu0 0.0
        %743 = vmatprep.subr.mxu0 0.0
        %744 = vmatpush1.xpose.msra.mxu0 0.0
        %745 = vmatprep.subr.mxu0 0.0
        %746 = vmatpush1.xpose.msra.mxu0 0.0
        %747 = vmatprep.subr.mxu0 0.0
        %748 = vmatpush1.xpose.msra.mxu0 0.0
        %749 = vmatprep.subr.mxu0 0.0
        %750 = vmatpush1.xpose.msra.mxu0 0.0
        %751 = vmatprep.subr.mxu0 0.0
        %752 = vmatpush1.xpose.msra.mxu0 0.0
        %753 = vmatprep.subr.mxu0 0.0
        %754 = vmatpush1.xpose.msra.mxu0 0.0
        %755 = vmatprep.subr.mxu0 0.0
        %756 = vmatpush1.xpose.msra.mxu0 0.0
        %757 = vmatprep.subr.mxu0 0.0
        %758 = vmatpush1.xpose.msra.mxu0 0.0
        %759 = vmatprep.subr.mxu0 0.0
        %760 = vmatpush1.xpose.msra.mxu0 0.0
        %761 = vmatprep.subr.mxu0 0.0
        %762 = vmatpush1.xpose.msra.mxu0 0.0
        %763 = vmatprep.subr.mxu0 0.0
        %764 = vmatpush1.xpose.msra.mxu0 0.0
        %765 = vmatprep.subr.mxu0 0.0
        %766 = vmatpush1.xpose.msra.mxu0 0.0
        %767 = vmatprep.subr.mxu0 0.0
        %768 = vmatpush1.xpose.msra.mxu0 0.0
        %769 = vmatprep.subr.mxu0 0.0
        %770 = vmatpush1.xpose.msra.mxu0 0.0
        %771 = vmatprep.subr.mxu0 0.0
        %772 = vmatpush1.xpose.msra.mxu0 0.0
        %773 = vmatprep.subr.mxu0 0.0
        %774 = vmatpush1.xpose.msra.mxu0 0.0
        %775 = vmatprep.subr.mxu0 0.0
        %776 = vmatpush1.xpose.msra.mxu0 0.0
        %777 = vmatprep.subr.mxu0 0.0
        %778 = vmatpush1.xpose.msra.mxu0 0.0
        %779 = vmatprep.subr.mxu0 0.0
        %780 = vmatpush1.xpose.msra.mxu0 0.0
        %781 = vmatprep.subr.mxu0 0.0
        %782 = vmatpush1.xpose.msra.mxu0 0.0
        %783 = vmatprep.subr.mxu0 0.0
        %784 = vmatpush1.xpose.msra.mxu0 0.0
        %785 = vmatprep.subr.mxu0 0.0
        %786 = vmatpush1.xpose.msra.mxu0 0.0
        %787 = vmatprep.mubr.f32.mxu0 0.0
        %788 = vmatmul.mubr.f32.gmra.mrb[0].mxu0 %v715
        %v789 = vpop.f32.mrb[0].mxu0
        %v790 = vadd.f32 0.0, %v789
        %v791 = vpop.f32.mrb[0].mxu0
        %792 = vdwg.mxu0
        %v793 = vld [vmem:[%s332] sm:$0x1]
        %v794 = vld [vmem:[%s332 + $0x1] sm:$0x1]
        %v795 = vld [vmem:[%s337] sm:$0x1]
        %v796 = vld [vmem:[%s337 + $0x1] sm:$0x1]
        %v797 = vlaneseq
        %v798 = vshrl.u32 %v797, 7
        %v799 = vlaneseq
        %v800 = vand.u32 %v799, 127
        %v801 = vlaneseq
        %v802 = vshrl.u32 %v801, 7
        %v803 = vsub.s32 0, %v802
        %v804 = vrot.slane %v795, %v803
        %v805 = vlaneseq
        %v806 = vshrl.u32 %v805, 7
        %v807 = vsub.s32 0, %v806
        %v808 = vrot.slane %v796, %v807
        %vm809 = vcmp.lt.s32.totalorder %v798, %v804
        %vm810 = vcmp.lt.s32.totalorder %v798, %v808
        %811 = vset.pattern.permute.xlu0 0
        %812 = vperm.xlu0 %811, %v793
        %v813 = vpop.permute.xlu0 %812
        %v814 = vlaneseq
        %v815 = vshrl.u32 %v814, 7
        %v816 = vsub.s32 0, %v815
        %v817 = vrot.slane %v813, %v816
        %818 = vset.pattern.permute.xlu0 0
        %819 = vperm.xlu0 %818, %v794
        %v820 = vpop.permute.xlu0 %819
        %v821 = vlaneseq
        %v822 = vshrl.u32 %v821, 7
        %v823 = vsub.s32 0, %v822
        %v824 = vrot.slane %v820, %v823
        %vm825 = vcmp.lt.s32.totalorder %v800, %v817
        %vm826 = vcmp.lt.s32.totalorder %v800, %v824
        %v827 = vsel %vm809, 1, 0
        %v828 = vsel %vm810, 1, 0
        %829 = vset.pattern.permute.xlu0 0
        %830 = vperm.xlu0 %829, %v827
        %v831 = vpop.permute.xlu0 %830
        %832 = vset.pattern.permute.xlu0 0
        %833 = vperm.xlu0 %832, %v828
        %v834 = vpop.permute.xlu0 %833
        %vm835 = vcmp.eq.s32.totalorder %v831, 1
        %vm836 = vcmp.eq.s32.totalorder %v834, 1
        %v837 = vsel %vm825, 1, 0
        %v838 = vsel %vm826, 1, 0
        %vm839 = vcmp.eq.s32.totalorder %v837, 1
        %vm840 = vcmp.eq.s32.totalorder %v838, 1
        %vm841 = vmand %vm835, %vm839
        %vm842 = vmand %vm836, %vm840
        %v843 = vsel %vm841, %v711, -inf
        %v844 = vsel %vm842, %v790, -inf
        %vm845 = vcmp.ge.s32.totalorder %v798, %v804
        %vm846 = vcmp.ge.s32.totalorder %v798, %v808
        %vm847 = vcmp.eq.s32.totalorder %v793, 0
        %vm848 = vcmp.eq.s32.totalorder %v794, 0
        %v849 = vsel %vm847, 1, 0
        %v850 = vsel %vm848, 1, 0
        %v851 = vlaneseq
        %v852 = vshrl.u32 %v851, 7
        %v853 = vsub.s32 0, %v852
        %v854 = vrot.slane %v849, %v853
        %v855 = vlaneseq
        %v856 = vshrl.u32 %v855, 7
        %v857 = vsub.s32 0, %v856
        %v858 = vrot.slane %v850, %v857
        %vm859 = vcmp.eq.s32.totalorder %v854, 1
        %vm860 = vcmp.eq.s32.totalorder %v858, 1
        %vm861 = vmor %vm845, %vm859
        %vm862 = vmor %vm846, %vm860
        %v863 = vsel %vm634, %v843, -inf
        %864 = vmax.xlane.f32.xlu0 %v863
        %v865 = vpop.xlane.xlu0 %864
        %v866 = vsel %vm634, %v844, -inf
        %867 = vmax.xlane.f32.xlu0 %v866
        %v868 = vpop.xlane.xlu0 %867
        %v869 = vsel %vm861, 0.0, %v865
        %v870 = vsel %vm862, 0.0, %v868
        %872 = vset.pattern.permute.xlu0 0
        %873 = vperm.xlu0 %872, %v869
        %v874 = vpop.permute.xlu0 %873
        %877 = vset.pattern.permute.xlu0 0
        %878 = vperm.xlu0 %877, %v870
        %v879 = vpop.permute.xlu0 %878
        %v881 = vsub.f32 %v843, %v874
        %v882 = vsub.f32 %v844, %v879
        %v883 = vmul.f32 %v881, 1.442695
        %v884 = vpow.pop %v883
        %v885 = vmul.f32 %v882, 1.442695
        %v886 = vpow.pop %v885
        %v887 = vsel %vm634, %v884, 0.0
        %888 = vadd.xlane.f32.xlu0 %v887
        %v889 = vpop.xlane.xlu0 %888
        %v890 = vsel %vm634, %v886, 0.0
        %891 = vadd.xlane.f32.xlu0 %v890
        %v892 = vpop.xlane.xlu0 %891
        %v893 = vsel %vm861, 1.0, %v889
        %v894 = vsel %vm862, 1.0, %v892
        %v895 = vrcp.pop %v893
        %v896 = vrcp.pop %v894
        %898 = vset.pattern.permute.xlu0 0
        %899 = vperm.xlu0 %898, %v895
        %v900 = vpop.permute.xlu0 %899
        %903 = vset.pattern.permute.xlu0 0
        %904 = vperm.xlu0 %903, %v896
        %v905 = vpop.permute.xlu0 %904
        %v907 = vmul.f32 %v884, %v900
        %v908 = vmul.f32 %v886, %v905
        %v909 = vsel %vm861, 1, 0
        %v910 = vsel %vm862, 1, 0
        %911 = vset.pattern.permute.xlu0 0
        %912 = vperm.xlu0 %911, %v909
        %v913 = vpop.permute.xlu0 %912
        %914 = vset.pattern.permute.xlu0 0
        %915 = vperm.xlu0 %914, %v910
        %v916 = vpop.permute.xlu0 %915
        %vm917 = vcmp.eq.s32.totalorder %v913, 1
        %vm918 = vcmp.eq.s32.totalorder %v916, 1
        %v919 = vsel %vm917, 0.0, %v907
        %v920 = vsel %vm918, 0.0, %v908
        %v922 = vsel %vm634, %v919, 0
        %924 = vmatprep.subr.mxu0 0.0
        %925 = vmatpush1.msra.mxu0 %v626
        %926 = vmatprep.subr.mxu0 0.0
        %927 = vmatpush1.msra.mxu0 %v627
        %928 = vmatprep.subr.mxu0 0.0
        %929 = vmatpush1.msra.mxu0 0.0
        %930 = vmatprep.subr.mxu0 0.0
        %931 = vmatpush1.msra.mxu0 0.0
        %932 = vmatprep.subr.mxu0 0.0
        %933 = vmatpush1.msra.mxu0 0.0
        %934 = vmatprep.subr.mxu0 0.0
        %935 = vmatpush1.msra.mxu0 0.0
        %936 = vmatprep.subr.mxu0 0.0
        %937 = vmatpush1.msra.mxu0 0.0
        %938 = vmatprep.subr.mxu0 0.0
        %939 = vmatpush1.msra.mxu0 0.0
        %940 = vmatprep.subr.mxu0 0.0
        %941 = vmatpush1.msra.mxu0 0.0
        %942 = vmatprep.subr.mxu0 0.0
        %943 = vmatpush1.msra.mxu0 0.0
        %944 = vmatprep.subr.mxu0 0.0
        %945 = vmatpush1.msra.mxu0 0.0
        %946 = vmatprep.subr.mxu0 0.0
        %947 = vmatpush1.msra.mxu0 0.0
        %948 = vmatprep.subr.mxu0 0.0
        %949 = vmatpush1.msra.mxu0 0.0
        %950 = vmatprep.subr.mxu0 0.0
        %951 = vmatpush1.msra.mxu0 0.0
        %952 = vmatprep.subr.mxu0 0.0
        %953 = vmatpush1.msra.mxu0 0.0
        %954 = vmatprep.subr.mxu0 0.0
        %955 = vmatpush1.msra.mxu0 0.0
        %956 = vmatprep.subr.mxu0 0.0
        %957 = vmatpush1.msra.mxu0 0.0
        %958 = vmatprep.subr.mxu0 0.0
        %959 = vmatpush1.msra.mxu0 0.0
        %960 = vmatprep.subr.mxu0 0.0
        %961 = vmatpush1.msra.mxu0 0.0
        %962 = vmatprep.subr.mxu0 0.0
        %963 = vmatpush1.msra.mxu0 0.0
        %964 = vmatprep.subr.mxu0 0.0
        %965 = vmatpush1.msra.mxu0 0.0
        %966 = vmatprep.subr.mxu0 0.0
        %967 = vmatpush1.msra.mxu0 0.0
        %968 = vmatprep.subr.mxu0 0.0
        %969 = vmatpush1.msra.mxu0 0.0
        %970 = vmatprep.subr.mxu0 0.0
        %971 = vmatpush1.msra.mxu0 0.0
        %972 = vmatprep.subr.mxu0 0.0
        %973 = vmatpush1.msra.mxu0 0.0
        %974 = vmatprep.subr.mxu0 0.0
        %975 = vmatpush1.msra.mxu0 0.0
        %976 = vmatprep.subr.mxu0 0.0
        %977 = vmatpush1.msra.mxu0 0.0
        %978 = vmatprep.subr.mxu0 0.0
        %979 = vmatpush1.msra.mxu0 0.0
        %980 = vmatprep.subr.mxu0 0.0
        %981 = vmatpush1.msra.mxu0 0.0
        %982 = vmatprep.subr.mxu0 0.0
        %983 = vmatpush1.msra.mxu0 0.0
        %984 = vmatprep.subr.mxu0 0.0
        %985 = vmatpush1.msra.mxu0 0.0
        %986 = vmatprep.subr.mxu0 0.0
        %987 = vmatpush1.msra.mxu0 0.0
        %988 = vmatprep.mubr.f32.mxu0 0.0
        %989 = vmatmul.mubr.f32.gmra.mrb[0].mxu0 %v922
        %v990 = vpop.f32.mrb[0].mxu0
        %v991 = vadd.f32 0.0, %v990
        %v992 = vpop.f32.mrb[0].mxu0
        %993 = vdwg.mxu0
        %v995 = vsel %vm634, %v920, 0
        %997 = vmatprep.subr.mxu0 0.0
        %998 = vmatpush1.msra.mxu0 %v628
        %999 = vmatprep.subr.mxu0 0.0
        %1000 = vmatpush1.msra.mxu0 %v629
        %1001 = vmatprep.subr.mxu0 0.0
        %1002 = vmatpush1.msra.mxu0 0.0
        %1003 = vmatprep.subr.mxu0 0.0
        %1004 = vmatpush1.msra.mxu0 0.0
        %1005 = vmatprep.subr.mxu0 0.0
        %1006 = vmatpush1.msra.mxu0 0.0
        %1007 = vmatprep.subr.mxu0 0.0
        %1008 = vmatpush1.msra.mxu0 0.0
        %1009 = vmatprep.subr.mxu0 0.0
        %1010 = vmatpush1.msra.mxu0 0.0
        %1011 = vmatprep.subr.mxu0 0.0
        %1012 = vmatpush1.msra.mxu0 0.0
        %1013 = vmatprep.subr.mxu0 0.0
        %1014 = vmatpush1.msra.mxu0 0.0
        %1015 = vmatprep.subr.mxu0 0.0
        %1016 = vmatpush1.msra.mxu0 0.0
        %1017 = vmatprep.subr.mxu0 0.0
        %1018 = vmatpush1.msra.mxu0 0.0
        %1019 = vmatprep.subr.mxu0 0.0
        %1020 = vmatpush1.msra.mxu0 0.0
        %1021 = vmatprep.subr.mxu0 0.0
        %1022 = vmatpush1.msra.mxu0 0.0
        %1023 = vmatprep.subr.mxu0 0.0
        %1024 = vmatpush1.msra.mxu0 0.0
        %1025 = vmatprep.subr.mxu0 0.0
        %1026 = vmatpush1.msra.mxu0 0.0
        %1027 = vmatprep.subr.mxu0 0.0
        %1028 = vmatpush1.msra.mxu0 0.0
        %1029 = vmatprep.subr.mxu0 0.0
        %1030 = vmatpush1.msra.mxu0 0.0
        %1031 = vmatprep.subr.mxu0 0.0
        %1032 = vmatpush1.msra.mxu0 0.0
        %1033 = vmatprep.subr.mxu0 0.0
        %1034 = vmatpush1.msra.mxu0 0.0
        %1035 = vmatprep.subr.mxu0 0.0
        %1036 = vmatpush1.msra.mxu0 0.0
        %1037 = vmatprep.subr.mxu0 0.0
        %1038 = vmatpush1.msra.mxu0 0.0
        %1039 = vmatprep.subr.mxu0 0.0
        %1040 = vmatpush1.msra.mxu0 0.0
        %1041 = vmatprep.subr.mxu0 0.0
        %1042 = vmatpush1.msra.mxu0 0.0
        %1043 = vmatprep.subr.mxu0 0.0
        %1044 = vmatpush1.msra.mxu0 0.0
        %1045 = vmatprep.subr.mxu0 0.0
        %1046 = vmatpush1.msra.mxu0 0.0
        %1047 = vmatprep.subr.mxu0 0.0
        %1048 = vmatpush1.msra.mxu0 0.0
        %1049 = vmatprep.subr.mxu0 0.0
        %1050 = vmatpush1.msra.mxu0 0.0
        %1051 = vmatprep.subr.mxu0 0.0
        %1052 = vmatpush1.msra.mxu0 0.0
        %1053 = vmatprep.subr.mxu0 0.0
        %1054 = vmatpush1.msra.mxu0 0.0
        %1055 = vmatprep.subr.mxu0 0.0
        %1056 = vmatpush1.msra.mxu0 0.0
        %1057 = vmatprep.subr.mxu0 0.0
        %1058 = vmatpush1.msra.mxu0 0.0
        %1059 = vmatprep.subr.mxu0 0.0
        %1060 = vmatpush1.msra.mxu0 0.0
        %1061 = vmatprep.mubr.f32.mxu0 0.0
        %1062 = vmatmul.mubr.f32.gmra.mrb[0].mxu0 %v995
        %v1063 = vpop.f32.mrb[0].mxu0
        %v1064 = vadd.f32 0.0, %v1063
        %v1065 = vpop.f32.mrb[0].mxu0
        %1066 = vdwg.mxu0
        %1067 = vst.msk [vmem:[%s316] sm:$0xff] %vm634, %v991
        %1068 = vst.msk [vmem:[%s316 + $0x8] sm:$0xff] %vm634, %v1064
        %s1069 = sand.u32 %s196, 1
        %s1070 = scalar_lea.sflag [#allocation3], %s1069
        %s1071 = sand.u32 %s196, 1
        %s1072 = smul.addr %s1071, 16
        %s1073 = scalar_lea.vmem [#allocation2], %s1072
        // Predicated region
        $region49: #{tpu_custom_call.1} parent=47 // pred_check
          %p1074 = pneg %p206
        $region50: #{tpu_custom_call.1} parent=47 // pred_check_branch
          %1076 = sbr.rel (%p1074) target = $region52
        $region51: #{tpu_custom_call.1} parent=47 // pred_region
          %s1077 = smul.u32 2, %s21
          %s1079 = ssub.s32 256, 256
          %1080 = vsyncadd %s1070, %s1079
          %s1081 = smul.addr %s1077, 128
          %s1082 = scalar_lea.hbm %s7, %s1081
          %s1083 = sshll.u32 %s1073, 4
          %s1084 = int_to_ptr.vmem [resolvable:$true] %s1083
          %1089 = dma.vmem_to_hbm [thread:$0]  %s1084, 256, %s1082, %s1070, 128, 128, 8
        $region52: #{tpu_custom_call.1} parent=47 // pred_fallthru
          _
      $region48: #{tpu_custom_call.1} parent=5 // pred_fallthru
        _
      %p1090 = scmp.le.s32.totalorder 2, %s16
      // Predicated region
      $region53: #{tpu_custom_call.1} parent=5 // pred_check
        %p1091 = pneg %p1090
      $region54: #{tpu_custom_call.1} parent=5 // pred_check_branch
        %1093 = sbr.rel (%p1091) target = $region56
      $region55: #{tpu_custom_call.1} parent=5 // pred_region
        %s1094 = ssub.s32 %s16, 2
        // Predicated region
        $region57: #{tpu_custom_call.1} parent=55 // pred_check
          %p1095 = pneg %p212
        $region58: #{tpu_custom_call.1} parent=55 // pred_check_branch
          %1097 = sbr.rel (%p1095) target = $region60
        $region59: #{tpu_custom_call.1} parent=55 // pred_region
          %s1098 = sand.u32 %s197, 1
          %s1099 = scalar_lea.sflag [#allocation3], %s1098
          %s1100 = sand.u32 %s197, 1
          %s1101 = smul.addr %s1100, 16
          %s1102 = scalar_lea.vmem [#allocation2], %s1101
          %1103 = dma.done %s1099, 256
        $region60: #{tpu_custom_call.1} parent=55 // pred_fallthru
          _
      $region56: #{tpu_custom_call.1} parent=5 // pred_fallthru
        _
    $region6: #{tpu_custom_call.1} parent=1 // loop_footer
      %s20 = sadd.s32 1, %s16
    $region7: #{tpu_custom_call.1} parent=1 // loop_footer_branch
      %15 = sbr.rel target = $region3
    $region8: #{tpu_custom_call.1} parent=1 // loop_exit
      _
    %1104 = vsyncpa [#allocation3], 1
    %s1105 = scalar_lea.sflag [#allocation3], 1
    %1106 = vsyncpa %s1105, 1

</llo_original>
